<compile_context>
chip_gen: v5e
topology: v5e:2x2
jax: 0.10.0
libtpu: 0.0.40
codegen_flags: <defaults>
</compile_context>

<pallas_src>
import jax
import jax.numpy as jnp
import numpy as np
from jax.experimental import pallas as pl
from jax.experimental.pallas import tpu as pltpu

IGNORE_INDEX = 255
IGNORE_REMAP = 19       # hardcoded in the reference PyTorch DiceLoss
SMOOTH = 1e-8


def _combined_loss_kernel(logits_ref, tgt_ref, out_ref,
                          inter_ref, psq_ref, tsq_ref, ce_ref, cnt_ref):
    t = pl.program_id(0)

    @pl.when(t == 0)
    def _():
        inter_ref[...] = jnp.zeros_like(inter_ref)
        psq_ref[...] = jnp.zeros_like(psq_ref)
        tsq_ref[...] = jnp.zeros_like(tsq_ref)
        ce_ref[...] = jnp.zeros_like(ce_ref)
        cnt_ref[...] = jnp.zeros_like(cnt_ref)

    logits = logits_ref[...].astype(jnp.float32)         # (N, C, T): pixels on lanes
    tgt = tgt_ref[...]                                    # (N, T) int32
    N, C, T = logits.shape

    # softmax statistics over the class (sublane) axis
    m = jnp.max(logits, axis=1, keepdims=True)            # (N, 1, T)
    z = logits - m                                        # (N, C, T)
    ez = jnp.exp(z)                                       # EUP
    sez = jnp.sum(ez, axis=1, keepdims=True)              # (N, 1, T) sublane reduce
    inv = 1.0 / sez                                       # exact div; small (N,1,T) only
    log_sez = jnp.log(sez)[:, 0, :]                       # (N, T)
    p = ez * inv                                          # softmax probs (N, C, T)

    cls = jax.lax.broadcasted_iota(jnp.int32, (N, C, T), 1)

    # CE one-hot: ignore_index (255) never matches a class in [0, C).
    ce_oh = (cls == tgt[:, None, :]).astype(jnp.float32)  # (N, C, T)
    # Dice one-hot: ignored pixels are remapped to class 19, one-hot over C+1
    # classes and the last channel dropped (faithful to the PyTorch code).
    # Whenever C <= 19 the remapped class falls off the kept channels, so the
    # dice one-hot coincides with the CE one-hot and we reuse it.
    if C <= IGNORE_REMAP:
        dice_oh = ce_oh
    else:
        tmod = jnp.where(tgt == IGNORE_INDEX, IGNORE_REMAP, tgt)
        dice_oh = (cls == tmod[:, None, :]).astype(jnp.float32)

    valid = (tgt != IGNORE_INDEX).astype(jnp.float32)     # (N, T)

    # dice statistics: reduce over the pixel (lane) axis into (N, C)
    inter_ref[...] += jnp.sum(p * dice_oh, axis=-1)
    psq_ref[...] += jnp.sum(p * p, axis=-1)               # includes ignored pixels (as in ref)
    tsq_ref[...] += jnp.sum(dice_oh, axis=-1)              # one-hot squared == one-hot

    # cross-entropy: -log_softmax[target] = log(sum exp z) - z[target]
    # (z_tgt is already 0 for ignored pixels since ce_oh is all-zero there)
    z_tgt = jnp.sum(z * ce_oh, axis=1)                     # (N, T) sublane reduce
    ce_ref[...] += valid * log_sez - z_tgt                 # lane-wide accumulator
    cnt_ref[...] += valid

    @pl.when(t == pl.num_programs(0) - 1)
    def _():
        dice_score = 2.0 * inter_ref[...] / (psq_ref[...] + tsq_ref[...] + SMOOTH)
        dice_mean = jnp.mean(dice_score, keepdims=True)    # (1, 1)
        # NOTE: an all-ignored batch gives cnt == 0 -> NaN, same as PyTorch CE.
        ce_loss = (jnp.sum(ce_ref[...], keepdims=True)
                   / jnp.sum(cnt_ref[...], keepdims=True))  # (1, 1)
        out_ref[...] = (ce_loss + 1.0 - dice_mean) * 0.5


def _pick_tile(hw, requested):
    """Largest lane-aligned pixel tile <= requested that divides H*W."""
    for cand in (16384, 8192, 4096, 2048, 1024, 512, 256, 128):
        if cand <= min(requested, hw) and hw % cand == 0:
            return cand
    return hw   # tiny / odd spatial sizes: single full-extent block


def combined_loss(inputs_nchw, targets_nhw, *, tile=8192):
    """inputs_nchw: (N, C, H, W) float32/bf16 logits; targets_nhw: (N, H, W) int."""
    N, C, H, W = inputs_nchw.shape
    HW = H * W
    tile = _pick_tile(HW, tile)

    # glue: NCHW -> (N, C, HW) is a free reshape (no transpose, no extra HBM pass)
    logits = inputs_nchw.reshape(N, C, HW)
    targets = targets_nhw.reshape(N, HW).astype(jnp.int32)

    grid = (HW // tile,)
    # TODO(synk): on v7x a leading "parallel" grid axis with per-core partial
    # accumulators would engage the second TensorCore; kept single-core here
    # (v5e/v6e have one TC and the kernel is HBM-read bound on the logits).
    out = pl.pallas_call(
        _combined_loss_kernel,
        out_shape=jax.ShapeDtypeStruct((1, 1), jnp.float32),
        grid=grid,
        in_specs=[
            pl.BlockSpec((N, C, tile), lambda t: (0, 0, t)),
            pl.BlockSpec((N, tile), lambda t: (0, t)),
        ],
        out_specs=pl.BlockSpec((1, 1), lambda t: (0, 0)),
        scratch_shapes=[
            pltpu.VMEM((N, C), jnp.float32),      # dice intersection
            pltpu.VMEM((N, C), jnp.float32),      # sum(p^2)
            pltpu.VMEM((N, C), jnp.float32),      # sum(onehot)
            pltpu.VMEM((N, tile), jnp.float32),   # CE numerator (lane-wide partials)
            pltpu.VMEM((N, tile), jnp.float32),   # valid-pixel count (lane-wide)
        ],
        compiler_params=pltpu.CompilerParams(
            dimension_semantics=("arbitrary",),
            vmem_limit_bytes=64 << 20,
        ),
    )(logits, targets)
    return out[0, 0]


def combined_loss_reference(inputs_nchw, targets_nhw):
    """Pure-JAX mirror of the PyTorch module, for verification."""
    N, C, H, W = inputs_nchw.shape
    p = jax.nn.softmax(inputs_nchw, axis=1)                       # (N,C,H,W)
    tmod = jnp.where(targets_nhw == IGNORE_INDEX, IGNORE_REMAP, targets_nhw)
    t1h = jax.nn.one_hot(tmod, C + 1, dtype=jnp.float32)          # (N,H,W,C+1)
    t1h = jnp.transpose(t1h, (0, 3, 1, 2))[:, :C, :, :]           # (N,C,H,W)
    inter = jnp.sum(p * t1h, axis=(2, 3))
    union = jnp.sum(p * p, axis=(2, 3)) + jnp.sum(t1h * t1h, axis=(2, 3))
    dice_loss = 1.0 - jnp.mean(2.0 * inter / (union + SMOOTH))

    logsm = jax.nn.log_softmax(inputs_nchw, axis=1)               # (N,C,H,W)
    valid = targets_nhw != IGNORE_INDEX
    tclamp = jnp.where(valid, targets_nhw, 0)
    picked = jnp.take_along_axis(logsm, tclamp[:, None, :, :], axis=1)[:, 0]
    ce = jnp.sum(jnp.where(valid, -picked, 0.0)) / jnp.sum(valid.astype(jnp.float32))
    return (ce + dice_loss) / 2.0


if __name__ == "__main__":
    key = jax.random.PRNGKey(0)
    N, C, H, W = 2, 19, 32, 32   # C=19 matches the module's hardcoded ignore remap

    k1, k2, k3 = jax.random.split(key, 3)
    inputs = jax.random.normal(k1, (N, C, H, W), dtype=jnp.float32)
    targets = jax.random.randint(k2, (N, H, W), 0, C, dtype=jnp.int32)
    ignore_mask = jax.random.bernoulli(k3, 0.1, (N, H, W))
    targets = jnp.where(ignore_mask, IGNORE_INDEX, targets)

    # tile=256 -> 4 grid steps, exercising the accumulation / finalize path
    loss = jax.block_until_ready(combined_loss(inputs, targets, tile=256))
    ref = jax.block_until_ready(combined_loss_reference(inputs, targets))

    np.testing.assert_allclose(np.asarray(loss), np.asarray(ref), rtol=2e-4, atol=1e-5)
    print("KERNEL_OK")
</pallas_src>

<mosaic_0001>
module attributes {stable_mosaic.version = 11 : i64} {
  func.func @_combined_loss_kernel(%arg0: i32, %arg1: memref<2x19x256xf32, #tpu.memory_space<vmem>>, %arg2: memref<2x256xi32, #tpu.memory_space<vmem>>, %arg3: memref<1x1xf32, #tpu.memory_space<vmem>>, %arg4: memref<2x19xf32, #tpu.memory_space<vmem>>, %arg5: memref<2x19xf32, #tpu.memory_space<vmem>>, %arg6: memref<2x19xf32, #tpu.memory_space<vmem>>, %arg7: memref<2x256xf32, #tpu.memory_space<vmem>>, %arg8: memref<2x256xf32, #tpu.memory_space<vmem>>) attributes {dimension_semantics = [#tpu.dimension_semantics<arbitrary>], iteration_bounds = array<i64: 4>, scalar_prefetch = 0 : i64, scratch_operands = 5 : i64, tpu.core_type = #tpu.core_type<tc>, window_params = [{transform_indices = @transform_0, window_bounds = array<i64: 2, 19, 256>}, {transform_indices = @transform_1, window_bounds = array<i64: 2, 256>}, {pipeline_mode = #tpu.pipeline_mode<synchronous>, transform_indices = @transform_2, window_bounds = array<i64: 1, 1>}]} {
    %c0_i32 = arith.constant 0 : i32
    %0 = arith.cmpi eq, %arg0, %c0_i32 : i32
    %1 = arith.extui %0 : i1 to i32
    %c0_i32_0 = arith.constant 0 : i32
    %2 = arith.cmpi ne, %1, %c0_i32_0 : i32
    scf.if %2 {
      %cst_32 = arith.constant 0.000000e+00 : f32
      %55 = vector.broadcast %cst_32 : f32 to vector<2x19xf32>
      %c0_33 = arith.constant 0 : index
      %c0_34 = arith.constant 0 : index
      %56 = vector.load %arg4[%c0_33, %c0_34] : memref<2x19xf32, #tpu.memory_space<vmem>>, vector<2x19xf32>
      tpu.vector_store %arg4[%c0_33, %c0_34], %55 {strides = array<i32>} : memref<2x19xf32, #tpu.memory_space<vmem>>, vector<2x19xf32>,
      %cst_35 = arith.constant 0.000000e+00 : f32
      %57 = vector.broadcast %cst_35 : f32 to vector<2x19xf32>
      %c0_36 = arith.constant 0 : index
      %c0_37 = arith.constant 0 : index
      %58 = vector.load %arg5[%c0_36, %c0_37] : memref<2x19xf32, #tpu.memory_space<vmem>>, vector<2x19xf32>
      tpu.vector_store %arg5[%c0_36, %c0_37], %57 {strides = array<i32>} : memref<2x19xf32, #tpu.memory_space<vmem>>, vector<2x19xf32>,
      %cst_38 = arith.constant 0.000000e+00 : f32
      %59 = vector.broadcast %cst_38 : f32 to vector<2x19xf32>
      %c0_39 = arith.constant 0 : index
      %c0_40 = arith.constant 0 : index
      %60 = vector.load %arg6[%c0_39, %c0_40] : memref<2x19xf32, #tpu.memory_space<vmem>>, vector<2x19xf32>
      tpu.vector_store %arg6[%c0_39, %c0_40], %59 {strides = array<i32>} : memref<2x19xf32, #tpu.memory_space<vmem>>, vector<2x19xf32>,
      %cst_41 = arith.constant 0.000000e+00 : f32
      %61 = vector.broadcast %cst_41 : f32 to vector<2x256xf32>
      %c0_42 = arith.constant 0 : index
      %c0_43 = arith.constant 0 : index
      %62 = vector.load %arg7[%c0_42, %c0_43] : memref<2x256xf32, #tpu.memory_space<vmem>>, vector<2x256xf32>
      tpu.vector_store %arg7[%c0_42, %c0_43], %61 {strides = array<i32>} : memref<2x256xf32, #tpu.memory_space<vmem>>, vector<2x256xf32>,
      %cst_44 = arith.constant 0.000000e+00 : f32
      %63 = vector.broadcast %cst_44 : f32 to vector<2x256xf32>
      %c0_45 = arith.constant 0 : index
      %c0_46 = arith.constant 0 : index
      %64 = vector.load %arg8[%c0_45, %c0_46] : memref<2x256xf32, #tpu.memory_space<vmem>>, vector<2x256xf32>
      tpu.vector_store %arg8[%c0_45, %c0_46], %63 {strides = array<i32>} : memref<2x256xf32, #tpu.memory_space<vmem>>, vector<2x256xf32>,
    } else {
    }
    %c0 = arith.constant 0 : index
    %c0_1 = arith.constant 0 : index
    %c0_2 = arith.constant 0 : index
    %3 = vector.load %arg1[%c0, %c0_1, %c0_2] : memref<2x19x256xf32, #tpu.memory_space<vmem>>, vector<2x19x256xf32>
    %c0_3 = arith.constant 0 : index
    %c0_4 = arith.constant 0 : index
    %4 = vector.load %arg2[%c0_3, %c0_4] : memref<2x256xi32, #tpu.memory_space<vmem>>, vector<2x256xi32>
    %cst = arith.constant dense<0xFF800000> : vector<2x256xf32>
    %5 = vector.multi_reduction <maximumf>, %3, %cst [1] : vector<2x19x256xf32> to vector<2x256xf32>
    %6 = vector.shape_cast %5 : vector<2x256xf32> to vector<2x1x256xf32>
    %7 = vector.broadcast %6 : vector<2x1x256xf32> to vector<2x19x256xf32>
    %8 = arith.subf %3, %7 : vector<2x19x256xf32>
    %9 = math.exp %8 : vector<2x19x256xf32>
    %cst_5 = arith.constant dense<0.000000e+00> : vector<2x256xf32>
    %10 = vector.multi_reduction <add>, %9, %cst_5 [1] : vector<2x19x256xf32> to vector<2x256xf32>
    %11 = vector.shape_cast %10 : vector<2x256xf32> to vector<2x1x256xf32>
    %cst_6 = arith.constant 1.000000e+00 : f32
    %12 = vector.broadcast %cst_6 : f32 to vector<2x1x256xf32>
    %13 = arith.divf %12, %11 : vector<2x1x256xf32>
    %14 = math.log %11 : vector<2x1x256xf32>
    %15 = vector.shape_cast %14 : vector<2x1x256xf32> to vector<2x256xf32>
    %16 = vector.broadcast %13 : vector<2x1x256xf32> to vector<2x19x256xf32>
    %17 = arith.mulf %9, %16 : vector<2x19x256xf32>
    %18 = tpu.iota {dimensions = array<i32: 1>} : vector<2x19x256xi32>
    %19 = vector.shape_cast %4 : vector<2x256xi32> to vector<2x1x256xi32>
    %20 = vector.broadcast %19 : vector<2x1x256xi32> to vector<2x19x256xi32>
    %21 = arith.cmpi eq, %18, %20 : vector<2x19x256xi32>
    %22 = arith.extui %21 : vector<2x19x256xi1> to vector<2x19x256xi32>
    %23 = arith.sitofp %22 : vector<2x19x256xi32> to vector<2x19x256xf32>
    %c255_i32 = arith.constant 255 : i32
    %24 = vector.broadcast %c255_i32 : i32 to vector<2x256xi32>
    %25 = arith.cmpi ne, %4, %24 : vector<2x256xi32>
    %26 = arith.extui %25 : vector<2x256xi1> to vector<2x256xi32>
    %27 = arith.sitofp %26 : vector<2x256xi32> to vector<2x256xf32>
    %c0_7 = arith.constant 0 : index
    %c0_8 = arith.constant 0 : index
    %28 = vector.load %arg4[%c0_7, %c0_8] : memref<2x19xf32, #tpu.memory_space<vmem>>, vector<2x19xf32>
    %29 = arith.mulf %17, %23 : vector<2x19x256xf32>
    %cst_9 = arith.constant dense<0.000000e+00> : vector<2x19xf32>
    %30 = vector.multi_reduction <add>, %29, %cst_9 [2] : vector<2x19x256xf32> to vector<2x19xf32>
    %31 = arith.addf %28, %30 : vector<2x19xf32>
    %c0_10 = arith.constant 0 : index
    %c0_11 = arith.constant 0 : index
    %32 = vector.load %arg4[%c0_10, %c0_11] : memref<2x19xf32, #tpu.memory_space<vmem>>, vector<2x19xf32>
    tpu.vector_store %arg4[%c0_10, %c0_11], %31 {strides = array<i32>} : memref<2x19xf32, #tpu.memory_space<vmem>>, vector<2x19xf32>,
    %c0_12 = arith.constant 0 : index
    %c0_13 = arith.constant 0 : index
    %33 = vector.load %arg5[%c0_12, %c0_13] : memref<2x19xf32, #tpu.memory_space<vmem>>, vector<2x19xf32>
    %34 = arith.mulf %17, %17 : vector<2x19x256xf32>
    %cst_14 = arith.constant dense<0.000000e+00> : vector<2x19xf32>
    %35 = vector.multi_reduction <add>, %34, %cst_14 [2] : vector<2x19x256xf32> to vector<2x19xf32>
    %36 = arith.addf %33, %35 : vector<2x19xf32>
    %c0_15 = arith.constant 0 : index
    %c0_16 = arith.constant 0 : index
    %37 = vector.load %arg5[%c0_15, %c0_16] : memref<2x19xf32, #tpu.memory_space<vmem>>, vector<2x19xf32>
    tpu.vector_store %arg5[%c0_15, %c0_16], %36 {strides = array<i32>} : memref<2x19xf32, #tpu.memory_space<vmem>>, vector<2x19xf32>,
    %c0_17 = arith.constant 0 : index
    %c0_18 = arith.constant 0 : index
    %38 = vector.load %arg6[%c0_17, %c0_18] : memref<2x19xf32, #tpu.memory_space<vmem>>, vector<2x19xf32>
    %cst_19 = arith.constant dense<0.000000e+00> : vector<2x19xf32>
    %39 = vector.multi_reduction <add>, %23, %cst_19 [2] : vector<2x19x256xf32> to vector<2x19xf32>
    %40 = arith.addf %38, %39 : vector<2x19xf32>
    %c0_20 = arith.constant 0 : index
    %c0_21 = arith.constant 0 : index
    %41 = vector.load %arg6[%c0_20, %c0_21] : memref<2x19xf32, #tpu.memory_space<vmem>>, vector<2x19xf32>
    tpu.vector_store %arg6[%c0_20, %c0_21], %40 {strides = array<i32>} : memref<2x19xf32, #tpu.memory_space<vmem>>, vector<2x19xf32>,
    %42 = arith.mulf %8, %23 : vector<2x19x256xf32>
    %cst_22 = arith.constant dense<0.000000e+00> : vector<2x256xf32>
    %43 = vector.multi_reduction <add>, %42, %cst_22 [1] : vector<2x19x256xf32> to vector<2x256xf32>
    %c0_23 = arith.constant 0 : index
    %c0_24 = arith.constant 0 : index
    %44 = vector.load %arg7[%c0_23, %c0_24] : memref<2x256xf32, #tpu.memory_space<vmem>>, vector<2x256xf32>
    %45 = arith.mulf %27, %15 : vector<2x256xf32>
    %46 = arith.subf %45, %43 : vector<2x256xf32>
    %47 = arith.addf %44, %46 : vector<2x256xf32>
    %c0_25 = arith.constant 0 : index
    %c0_26 = arith.constant 0 : index
    %48 = vector.load %arg7[%c0_25, %c0_26] : memref<2x256xf32, #tpu.memory_space<vmem>>, vector<2x256xf32>
    tpu.vector_store %arg7[%c0_25, %c0_26], %47 {strides = array<i32>} : memref<2x256xf32, #tpu.memory_space<vmem>>, vector<2x256xf32>,
    %c0_27 = arith.constant 0 : index
    %c0_28 = arith.constant 0 : index
    %49 = vector.load %arg8[%c0_27, %c0_28] : memref<2x256xf32, #tpu.memory_space<vmem>>, vector<2x256xf32>
    %50 = arith.addf %49, %27 : vector<2x256xf32>
    %c0_29 = arith.constant 0 : index
    %c0_30 = arith.constant 0 : index
    %51 = vector.load %arg8[%c0_29, %c0_30] : memref<2x256xf32, #tpu.memory_space<vmem>>, vector<2x256xf32>
    tpu.vector_store %arg8[%c0_29, %c0_30], %50 {strides = array<i32>} : memref<2x256xf32, #tpu.memory_space<vmem>>, vector<2x256xf32>,
    %c3_i32 = arith.constant 3 : i32
    %52 = arith.cmpi eq, %arg0, %c3_i32 : i32
    %53 = arith.extui %52 : i1 to i32
    %c0_i32_31 = arith.constant 0 : i32
    %54 = arith.cmpi ne, %53, %c0_i32_31 : i32
    scf.if %54 {
      %c0_32 = arith.constant 0 : index
      %c0_33 = arith.constant 0 : index
      %55 = vector.load %arg4[%c0_32, %c0_33] : memref<2x19xf32, #tpu.memory_space<vmem>>, vector<2x19xf32>
      %cst_34 = arith.constant 2.000000e+00 : f32
      %56 = vector.broadcast %cst_34 : f32 to vector<2x19xf32>
      %57 = arith.mulf %56, %55 : vector<2x19xf32>
      %c0_35 = arith.constant 0 : index
      %c0_36 = arith.constant 0 : index
      %58 = vector.load %arg5[%c0_35, %c0_36] : memref<2x19xf32, #tpu.memory_space<vmem>>, vector<2x19xf32>
      %c0_37 = arith.constant 0 : index
      %c0_38 = arith.constant 0 : index
      %59 = vector.load %arg6[%c0_37, %c0_38] : memref<2x19xf32, #tpu.memory_space<vmem>>, vector<2x19xf32>
      %60 = arith.addf %58, %59 : vector<2x19xf32>
      %cst_39 = arith.constant 9.99999993E-9 : f32
      %61 = vector.broadcast %cst_39 : f32 to vector<2x19xf32>
      %62 = arith.addf %60, %61 : vector<2x19xf32>
      %63 = arith.divf %57, %62 : vector<2x19xf32>
      %64 = vector.shape_cast %63 : vector<2x19xf32> to vector<1x2x19xf32>
      %cst_40 = arith.constant dense<0.000000e+00> : vector<1xf32>
      %65 = vector.multi_reduction <add>, %64, %cst_40 [1, 2] : vector<1x2x19xf32> to vector<1xf32>
      %66 = vector.shape_cast %65 : vector<1xf32> to vector<1x1x1xf32>
      %67 = vector.extract %66[0, 0, 0] : f32 from vector<1x1x1xf32>
      %68 = vector.broadcast %67 : f32 to vector<1x1xf32>
      %cst_41 = arith.constant 3.800000e+01 : f32
      %69 = vector.broadcast %cst_41 : f32 to vector<1x1xf32>
      %70 = arith.divf %68, %69 : vector<1x1xf32>
      %c0_42 = arith.constant 0 : index
      %c0_43 = arith.constant 0 : index
      %71 = vector.load %arg7[%c0_42, %c0_43] : memref<2x256xf32, #tpu.memory_space<vmem>>, vector<2x256xf32>
      %72 = vector.shape_cast %71 : vector<2x256xf32> to vector<1x2x256xf32>
      %cst_44 = arith.constant dense<0.000000e+00> : vector<1xf32>
      %73 = vector.multi_reduction <add>, %72, %cst_44 [1, 2] : vector<1x2x256xf32> to vector<1xf32>
      %74 = vector.shape_cast %73 : vector<1xf32> to vector<1x1x1xf32>
      %75 = vector.extract %74[0, 0, 0] : f32 from vector<1x1x1xf32>
      %76 = vector.broadcast %75 : f32 to vector<1x1xf32>
      %c0_45 = arith.constant 0 : index
      %c0_46 = arith.constant 0 : index
      %77 = vector.load %arg8[%c0_45, %c0_46] : memref<2x256xf32, #tpu.memory_space<vmem>>, vector<2x256xf32>
      %78 = vector.shape_cast %77 : vector<2x256xf32> to vector<1x2x256xf32>
      %cst_47 = arith.constant dense<0.000000e+00> : vector<1xf32>
      %79 = vector.multi_reduction <add>, %78, %cst_47 [1, 2] : vector<1x2x256xf32> to vector<1xf32>
      %80 = vector.shape_cast %79 : vector<1xf32> to vector<1x1x1xf32>
      %81 = vector.extract %80[0, 0, 0] : f32 from vector<1x1x1xf32>
      %82 = vector.broadcast %81 : f32 to vector<1x1xf32>
      %83 = arith.divf %76, %82 : vector<1x1xf32>
      %cst_48 = arith.constant 1.000000e+00 : f32
      %84 = vector.broadcast %cst_48 : f32 to vector<1x1xf32>
      %85 = arith.addf %83, %84 : vector<1x1xf32>
      %86 = arith.subf %85, %70 : vector<1x1xf32>
      %cst_49 = arith.constant 5.000000e-01 : f32
      %87 = vector.broadcast %cst_49 : f32 to vector<1x1xf32>
      %88 = arith.mulf %86, %87 : vector<1x1xf32>
      %c0_50 = arith.constant 0 : index
      %c0_51 = arith.constant 0 : index
      %89 = vector.load %arg3[%c0_50, %c0_51] : memref<1x1xf32, #tpu.memory_space<vmem>>, vector<1x1xf32>
      tpu.vector_store %arg3[%c0_50, %c0_51], %88 {strides = array<i32>} : memref<1x1xf32, #tpu.memory_space<vmem>>, vector<1x1xf32>,
    } else {
    }
    return
  }
  func.func @transform_0(%arg0: i32) -> (i32, i32, i32) {
    %c0_i32 = arith.constant 0 : i32
    %c0_i32_0 = arith.constant 0 : i32
    %c0_i32_1 = arith.constant 0 : i32
    return %c0_i32, %c0_i32_0, %arg0 : i32, i32, i32
  }
  func.func @transform_1(%arg0: i32) -> (i32, i32) {
    %c0_i32 = arith.constant 0 : i32
    %c0_i32_0 = arith.constant 0 : i32
    return %c0_i32, %arg0 : i32, i32
  }
  func.func @transform_2(%arg0: i32) -> (i32, i32) {
    %c0_i32 = arith.constant 0 : i32
    %c0_i32_0 = arith.constant 0 : i32
    %c0_i32_1 = arith.constant 0 : i32
    return %c0_i32, %c0_i32_0 : i32, i32
  }
}

</mosaic_0001>

<llo_original>
// kernel: tpu_custom_call.1
$region0: #{tpu_custom_call.1}
  #allocation0 [shape = 'u32[]', space=smem, size = 0x4, offset = 0x4, fixed_abs, tag = 'smem constant byte address 0x4 - core index']
  #allocation1 [shape = 'u32[72,128]{1,0:T(1,128)}', space=vmem, size = 0x9000, scoped, tag = 'internal scratch']
  #allocation2 [shape = 'f32[2,19]{1,0:T(2,128)}', space=vmem, size = 0x400, scoped, tag = 'scratch operand']
  #allocation3 [shape = 'f32[2,19]{1,0:T(2,128)}', space=vmem, size = 0x400, scoped, tag = 'scratch operand']
  #allocation4 [shape = 'f32[2,19]{1,0:T(2,128)}', space=vmem, size = 0x400, scoped, tag = 'scratch operand']
  #allocation5 [shape = 'f32[2,256]{1,0:T(2,128)}', space=vmem, size = 0x800, scoped, tag = 'scratch operand']
  #allocation6 [shape = 'f32[2,256]{1,0:T(2,128)}', space=vmem, size = 0x800, scoped, tag = 'scratch operand']
  %s0 = inlined_call_operand.vmem [shape: f32[2,19,1024], index: 0, kind: input, shape index: {}]
  %s1 = inlined_call_operand.vmem [shape: s32[2,1024], index: 1, kind: input, shape index: {}]
  %s2 = inlined_call_operand.hbm [shape: f32[1,1], index: 2, kind: output, shape index: {}]
  %s3 = sld [smem:[#allocation0]]
  $region72: #{tpu_custom_call.1} parent=0
    _
  %s5 = ssub.s32 1, %s3
  %s6 = scalar_select 0, %s5, %s3
  $region1: #{tpu_custom_call.1} parent=0
    #allocation7 [shape = 'u8[98304]{0}', space=vmem, size = 0x18000, scoped, tag = 'input window, operand 0']
    #allocation8 [shape = 'u8[512]{0}', space=vmem, size = 0x400, scoped, tag = 'output window, operand 0, single buffered']
    #allocation9 [shape = 's32[2]{0}', space=sflag, size = 0x8, scoped, tag = 'scoped memory for tpu_custom_call.1']
    %7 = vsyncpa [#allocation9], 0
    loop: start=0, step=1, limit=6
    $region2: #{tpu_custom_call.1} parent=1 // loop_pre_header
      _
    $region3: #{tpu_custom_call.1} parent=1 // loop_header
      %s9 = sphi 0, %s13
      %p10 = scmp.ge.s32.totalorder %s9, 6
      %s19 = sphi 0, %s21
      %s22 = sphi 0, %s19
      %s23 = sphi 0, %s22
      %s39 = sphi 0, %s23
      %s45 = sphi 0, %s47
      %s48 = sphi 0, %s45
      %s49 = sphi 0, %s48
      %s65 = sphi 0, %s49
      %s69 = sphi 0, %s69
      %s71 = sphi 0, %s69
      %s72 = sphi 0, %s71
      %s86 = sphi 0, %s72
    $region4: #{tpu_custom_call.1} parent=1 // loop_header_branch
      %12 = sbr.rel (%p10) target = $region8
    $region5: #{tpu_custom_call.1} parent=1 // loop_body
      %s14 = ssub.s32 %s9, 1
      %s15 = ssub.s32 %s9, 2
      %s16 = sadd.s32 %s9, 1
      %s17 = ssub.s32 %s9, %s16
      %p18 = scmp.eq.s32.totalorder %s17, 0
      %s20 = sadd.s32 %s19, 1
      %s21 = scalar_select %p18, %s19, %s20
      %p24 = pneg %p18
      %p25 = scmp.eq.s32.totalorder %s9, 3
      %p26 = por %p24, %p25
      %p27 = scmp.ne.s32.totalorder %s19, %s22
      %p28 = scmp.eq.s32.totalorder %s9, 0
      %p29 = por %p27, %p28
      %p30 = scmp.ne.s32.totalorder %s19, %s22
      %p31 = scmp.eq.s32.totalorder %s14, 3
      %p32 = por %p30, %p31
      %p33 = scmp.ne.s32.totalorder %s22, %s23
      %p34 = scmp.eq.s32.totalorder %s14, 0
      %p35 = por %p33, %p34
      %p36 = scmp.ne.s32.totalorder %s22, %s23
      %p37 = scmp.eq.s32.totalorder %s15, 3
      %p38 = por %p36, %p37
      %p40 = scmp.ne.s32.totalorder %s23, %s39
      %p41 = scmp.eq.s32.totalorder %s15, 0
      %p42 = por %p40, %p41
      %s43 = ssub.s32 %s9, %s16
      %p44 = scmp.eq.s32.totalorder %s43, 0
      %s46 = sadd.s32 %s45, 1
      %s47 = scalar_select %p44, %s45, %s46
      %p50 = pneg %p44
      %p51 = scmp.eq.s32.totalorder %s9, 3
      %p52 = por %p50, %p51
      %p53 = scmp.ne.s32.totalorder %s45, %s48
      %p54 = scmp.eq.s32.totalorder %s9, 0
      %p55 = por %p53, %p54
      %p56 = scmp.ne.s32.totalorder %s45, %s48
      %p57 = scmp.eq.s32.totalorder %s14, 3
      %p58 = por %p56, %p57
      %p59 = scmp.ne.s32.totalorder %s48, %s49
      %p60 = scmp.eq.s32.totalorder %s14, 0
      %p61 = por %p59, %p60
      %p62 = scmp.ne.s32.totalorder %s48, %s49
      %p63 = scmp.eq.s32.totalorder %s15, 3
      %p64 = por %p62, %p63
      %p66 = scmp.ne.s32.totalorder %s49, %s65
      %p67 = scmp.eq.s32.totalorder %s15, 0
      %p68 = por %p66, %p67
      %s70 = sadd.s32 %s69, 1
      %p73 = scmp.eq.s32.totalorder %s9, 3
      %p74 = scmp.ne.s32.totalorder %s69, %s71
      %p75 = scmp.eq.s32.totalorder %s9, 0
      %p76 = por %p74, %p75
      %p77 = scmp.ne.s32.totalorder %s69, %s71
      %p78 = scmp.eq.s32.totalorder %s14, 3
      %p79 = por %p77, %p78
      %p80 = scmp.ne.s32.totalorder %s71, %s72
      %p81 = scmp.eq.s32.totalorder %s14, 0
      %p82 = por %p80, %p81
      %p83 = scmp.ne.s32.totalorder %s71, %s72
      %p84 = scmp.eq.s32.totalorder %s15, 3
      %p85 = por %p83, %p84
      %p87 = scmp.ne.s32.totalorder %s72, %s86
      %p88 = scmp.eq.s32.totalorder %s15, 0
      %p89 = por %p87, %p88
      %p90 = scmp.le.s32.totalorder 1, %s9
      %p91 = scmp.lt.s32.totalorder %s9, 5
      %p92 = pnand %p90, %p91
      %p93 = pneg %p92
      // Predicated region
      $region9: #{tpu_custom_call.1} parent=5 // pred_check
        _
      $region10: #{tpu_custom_call.1} parent=5 // pred_check_branch
        %95 = sbr.rel (%p92) target = $region12
      $region11: #{tpu_custom_call.1} parent=5 // pred_region
        %s96 = ssub.s32 %s9, 1
      $region12: #{tpu_custom_call.1} parent=5 // pred_fallthru
        _
      %p97 = scmp.lt.s32.totalorder %s9, 4
      // Predicated region
      $region13: #{tpu_custom_call.1} parent=5 // pred_check
        %p98 = pneg %p97
      $region14: #{tpu_custom_call.1} parent=5 // pred_check_branch
        %100 = sbr.rel (%p98) target = $region16
      $region15: #{tpu_custom_call.1} parent=5 // pred_region
        // Predicated region
        $region17: #{tpu_custom_call.1} parent=15 // pred_check
          %p101 = pneg %p29
        $region18: #{tpu_custom_call.1} parent=15 // pred_check_branch
          %103 = sbr.rel (%p101) target = $region20
        $region19: #{tpu_custom_call.1} parent=15 // pred_region
          %s104 = sand.u32 %s19, 1
          %s105 = sand.u32 %s19, 1
          %s106 = smul.addr %s105, 96
          %s107 = scalar_lea.vmem [#allocation7], %s106
          %s108 = smul.u32 2, %s9
          %s109 = smul.addr %s108, 8
          %s110 = scalar_lea.vmem %s0, %s109
          // Predicated region
          $region21: #{tpu_custom_call.1} parent=19 // pred_check
            _
          $region22: #{tpu_custom_call.1} parent=19 // pred_check_branch
            %112 = sbr.rel (0) target = $region24
          $region23: #{tpu_custom_call.1} parent=19 // pred_region
            // Predicated region
            $region25: #{tpu_custom_call.1} parent=23 // pred_check
              _
            $region26: #{tpu_custom_call.1} parent=23 // pred_check_branch
              %114 = sbr.rel (0) target = $region28
            $region27: #{tpu_custom_call.1} parent=23 // pred_region
              loop: start=0, step=1, limit=1
              $region29: #{tpu_custom_call.1} parent=27 // loop_pre_header
                _
              $region30: #{tpu_custom_call.1} parent=27 // loop_header
                %s116 = sphi 0, %s120
                %p117 = scmp.ge.s32.totalorder %s116, 1
                %s121 = sphi %s110, %s110
                %s122 = sphi %s107, %s107
              $region31: #{tpu_custom_call.1} parent=27 // loop_header_branch
                %119 = sbr.rel (%p117) target = $region35
              $region32: #{tpu_custom_call.1} parent=27 // loop_body
                %v123 = vld [vmem:[%s121] sm:$0xff]
                %124 = vst [vmem:[%s122] sm:$0xff] %v123
                %v125 = vld [vmem:[%s121 + $0x8] sm:$0xff]
                %126 = vst [vmem:[%s122 + $0x8] sm:$0xff] %v125
                %v127 = vld [vmem:[%s121 + $0x40] sm:$0xff]
                %128 = vst [vmem:[%s122 + $0x10] sm:$0xff] %v127
                %v129 = vld [vmem:[%s121 + $0x48] sm:$0xff]
                %130 = vst [vmem:[%s122 + $0x18] sm:$0xff] %v129
                %v131 = vld [vmem:[%s121 + $0x80] sm:$0xff]
                %132 = vst [vmem:[%s122 + $0x20] sm:$0xff] %v131
                %v133 = vld [vmem:[%s121 + $0x88] sm:$0xff]
                %134 = vst [vmem:[%s122 + $0x28] sm:$0xff] %v133
                %v135 = vld [vmem:[%s121 + $0xc0] sm:$0xff]
                %136 = vst [vmem:[%s122 + $0x30] sm:$0xff] %v135
                %v137 = vld [vmem:[%s121 + $0xc8] sm:$0xff]
                %138 = vst [vmem:[%s122 + $0x38] sm:$0xff] %v137
                %v139 = vld [vmem:[%s121 + $0x100] sm:$0xff]
                %140 = vst [vmem:[%s122 + $0x40] sm:$0xff] %v139
                %v141 = vld [vmem:[%s121 + $0x108] sm:$0xff]
                %142 = vst [vmem:[%s122 + $0x48] sm:$0xff] %v141
                %v143 = vld [vmem:[%s121 + $0x140] sm:$0xff]
                %144 = vst [vmem:[%s122 + $0x50] sm:$0xff] %v143
                %v145 = vld [vmem:[%s121 + $0x148] sm:$0xff]
                %146 = vst [vmem:[%s122 + $0x58] sm:$0xff] %v145
              $region33: #{tpu_custom_call.1} parent=27 // loop_footer
                %s120 = sadd.s32 1, %s116
              $region34: #{tpu_custom_call.1} parent=27 // loop_footer_branch
                %115 = sbr.rel target = $region30
              $region35: #{tpu_custom_call.1} parent=27 // loop_exit
                _
            $region28: #{tpu_custom_call.1} parent=23 // pred_fallthru
              _
            // Predicated region
            $region36: #{tpu_custom_call.1} parent=23 // pred_check
              _
            $region37: #{tpu_custom_call.1} parent=23 // pred_check_branch
              %148 = sbr.rel target = $region39
            $region38: #{tpu_custom_call.1} parent=23 // pred_region
              _
            $region39: #{tpu_custom_call.1} parent=23 // pred_fallthru
              _
          $region24: #{tpu_custom_call.1} parent=19 // pred_fallthru
            _
          %149 = vnop
        $region20: #{tpu_custom_call.1} parent=15 // pred_fallthru
          _
        // Predicated region
        $region40: #{tpu_custom_call.1} parent=15 // pred_check
          %p150 = pneg %p55
        $region41: #{tpu_custom_call.1} parent=15 // pred_check_branch
          %152 = sbr.rel (%p150) target = $region43
        $region42: #{tpu_custom_call.1} parent=15 // pred_region
          %s153 = smul.u32 2, %s9
          %p154 = scmp.lt.s32.totalorder %s153, 7
          %s155 = scalar_select %p154, %s153, 7
          %s156 = smul.addr %s155, 2
          %s157 = scalar_lea.vmem %s1, %s156
          %s158 = smul.u32 2, %s9
        $region43: #{tpu_custom_call.1} parent=15 // pred_fallthru
          _
      $region16: #{tpu_custom_call.1} parent=5 // pred_fallthru
        _
      %p159 = scmp.le.s32.totalorder 1, %s9
      %p160 = scmp.lt.s32.totalorder %s9, 5
      %p161 = pnand %p159, %p160
      %p162 = pneg %p161
      // Predicated region
      $region44: #{tpu_custom_call.1} parent=5 // pred_check
        _
      $region45: #{tpu_custom_call.1} parent=5 // pred_check_branch
        %164 = sbr.rel (%p161) target = $region47
      $region46: #{tpu_custom_call.1} parent=5 // pred_region
        %s165 = ssub.s32 %s9, 1
        %s166 = sand.u32 %s22, 1
        %s167 = sand.u32 %s22, 1
        %s168 = smul.addr %s167, 96
        %s169 = scalar_lea.vmem [#allocation7], %s168
        // Predicated region
        $region48: #{tpu_custom_call.1} parent=46 // pred_check
          %p170 = pneg %p35
        $region49: #{tpu_custom_call.1} parent=46 // pred_check_branch
          %172 = sbr.rel (%p170) target = $region51
        $region50: #{tpu_custom_call.1} parent=46 // pred_region
          _
        $region51: #{tpu_custom_call.1} parent=46 // pred_fallthru
          _
        %s173 = sand.u32 %s22, 1
        %s174 = sand.u32 %s22, 1
        %s175 = smul.addr %s174, 96
        %s176 = scalar_lea.vmem [#allocation7], %s175
        %p177 = pneg %p35
        %p178 = pneg %p32
        %s179 = smul.u32 2, %s14
        %p180 = scmp.lt.s32.totalorder %s179, 7
        %s181 = scalar_select %p180, %s179, 7
        %s182 = smul.addr %s181, 2
        %s183 = scalar_lea.vmem %s1, %s182
        %p184 = pneg %p61
        %p185 = pneg %p58
        %p186 = pneg %p82
        %p187 = pneg %p79
        %s188 = smul.u32 2, %s14
        %s189 = smul.u32 2, %s14
        %p190 = scmp.lt.s32.totalorder %s189, 7
        %s191 = scalar_select %p190, %s189, 7
        %s192 = smul.addr %s191, 2
        %s193 = scalar_lea.vmem %s1, %s192
        %s194 = smul.u32 2, %s14
        %p195 = scmp.eq.s32.totalorder %s14, 0
        // Predicated region
        $region52: #{tpu_custom_call.1} parent=46 // pred_check
          %p196 = pneg %p195
        $region53: #{tpu_custom_call.1} parent=46 // pred_check_branch
          %198 = sbr.rel (%p196) target = $region55
        $region54: #{tpu_custom_call.1} parent=46 // pred_region
          %vm199 = vcmask 148480
          %200 = vst.msk [vmem:[#allocation2] sm:$0x3] %vm199, 0.0
          %201 = vst.msk [vmem:[#allocation3] sm:$0x3] %vm199, 0.0
          %202 = vst.msk [vmem:[#allocation4] sm:$0x3] %vm199, 0.0
          %203 = vst [vmem:[#allocation5] sm:$0xf] 0.0
          %204 = vst [vmem:[#allocation6] sm:$0xf] 0.0
        $region55: #{tpu_custom_call.1} parent=46 // pred_fallthru
          _
        %v205 = vld [vmem:[%s169] sm:$0xff]
        %v206 = vld [vmem:[%s169 + $0x8] sm:$0xff]
        %v207 = vld [vmem:[%s169 + $0x10] sm:$0xff]
        %v208 = vld [vmem:[%s169 + $0x18] sm:$0xff]
        %v209 = vld [vmem:[%s169 + $0x20] sm:$0x7]
        %v210 = vld [vmem:[%s169 + $0x28] sm:$0x7]
        %v211 = vld [vmem:[%s169 + $0x30] sm:$0xff]
        %v212 = vld [vmem:[%s169 + $0x38] sm:$0xff]
        %v213 = vld [vmem:[%s169 + $0x40] sm:$0xff]
        %v214 = vld [vmem:[%s169 + $0x48] sm:$0xff]
        %v215 = vld [vmem:[%s169 + $0x50] sm:$0x7]
        %v216 = vld [vmem:[%s169 + $0x58] sm:$0x7]
        %v217 = vld [vmem:[%s193] sm:$0xf]
        %v218 = vmax.f32 %v205, %v207
        %vm219 = vcmask 1042432
        %v220 = vsel %vm219, %v209, -inf
        %v221 = vmax.f32 %v218, %v220
        %v222 = vrot.slane %v221, 4
        %v223 = vmax.f32 %v221, %v222
        %v224 = vrot.slane %v223, 2
        %v225 = vmax.f32 %v223, %v224
        %v226 = vrot.slane %v225, 1
        %v227 = vmax.f32 %v225, %v226
        %v228 = vmax.f32 %v206, %v208
        %v229 = vsel %vm219, %v210, -inf
        %v230 = vmax.f32 %v228, %v229
        %v231 = vrot.slane %v230, 4
        %v232 = vmax.f32 %v230, %v231
        %v233 = vrot.slane %v232, 2
        %v234 = vmax.f32 %v232, %v233
        %v235 = vrot.slane %v234, 1
        %v236 = vmax.f32 %v234, %v235
        %v237 = vmax.f32 %v211, %v213
        %v238 = vsel %vm219, %v215, -inf
        %v239 = vmax.f32 %v237, %v238
        %v240 = vrot.slane %v239, 4
        %v241 = vmax.f32 %v239, %v240
        %v242 = vrot.slane %v241, 2
        %v243 = vmax.f32 %v241, %v242
        %v244 = vrot.slane %v243, 1
        %v245 = vmax.f32 %v243, %v244
        %v246 = vmax.f32 %v212, %v214
        %v247 = vsel %vm219, %v216, -inf
        %v248 = vmax.f32 %v246, %v247
        %v249 = vrot.slane %v248, 4
        %v250 = vmax.f32 %v248, %v249
        %v251 = vrot.slane %v250, 2
        %v252 = vmax.f32 %v250, %v251
        %v253 = vrot.slane %v252, 1
        %v254 = vmax.f32 %v252, %v253
        %v255 = vsub.f32 %v205, %v227
        %v256 = vsub.f32 %v206, %v236
        %v257 = vsub.f32 %v207, %v227
        %v258 = vsub.f32 %v208, %v236
        %v259 = vsub.f32 %v209, %v227
        %v260 = vsub.f32 %v210, %v236
        %v261 = vsub.f32 %v211, %v245
        %v262 = vsub.f32 %v212, %v254
        %v263 = vsub.f32 %v213, %v245
        %v264 = vsub.f32 %v214, %v254
        %v265 = vsub.f32 %v215, %v245
        %v266 = vsub.f32 %v216, %v254
        %v267 = vmul.f32 %v255, 1.442695
        %v268 = vpow.pop %v267
        %v269 = vmul.f32 %v256, 1.442695
        %v270 = vpow.pop %v269
        %v271 = vmul.f32 %v257, 1.442695
        %v272 = vpow.pop %v271
        %v273 = vmul.f32 %v258, 1.442695
        %v274 = vpow.pop %v273
        %v275 = vmul.f32 %v259, 1.442695
        %v276 = vpow.pop %v275
        %v277 = vmul.f32 %v260, 1.442695
        %v278 = vpow.pop %v277
        %v279 = vmul.f32 %v261, 1.442695
        %v280 = vpow.pop %v279
        %v281 = vmul.f32 %v262, 1.442695
        %v282 = vpow.pop %v281
        %v283 = vmul.f32 %v263, 1.442695
        %v284 = vpow.pop %v283
        %v285 = vmul.f32 %v264, 1.442695
        %v286 = vpow.pop %v285
        %v287 = vmul.f32 %v265, 1.442695
        %v288 = vpow.pop %v287
        %v289 = vmul.f32 %v266, 1.442695
        %v290 = vpow.pop %v289
        %v291 = vadd.f32 %v268, %v272
        %v292 = vsel %vm219, %v276, 0.0
        %v293 = vadd.f32 %v291, %v292
        %v294 = vrot.slane %v293, 4
        %v295 = vadd.f32 %v293, %v294
        %v296 = vrot.slane %v295, 2
        %v297 = vadd.f32 %v295, %v296
        %v298 = vrot.slane %v297, 1
        %v299 = vadd.f32 %v297, %v298
        %v300 = vadd.f32 %v270, %v274
        %v301 = vsel %vm219, %v278, 0.0
        %v302 = vadd.f32 %v300, %v301
        %v303 = vrot.slane %v302, 4
        %v304 = vadd.f32 %v302, %v303
        %v305 = vrot.slane %v304, 2
        %v306 = vadd.f32 %v304, %v305
        %v307 = vrot.slane %v306, 1
        %v308 = vadd.f32 %v306, %v307
        %v309 = vadd.f32 %v280, %v284
        %v310 = vsel %vm219, %v288, 0.0
        %v311 = vadd.f32 %v309, %v310
        %v312 = vrot.slane %v311, 4
        %v313 = vadd.f32 %v311, %v312
        %v314 = vrot.slane %v313, 2
        %v315 = vadd.f32 %v313, %v314
        %v316 = vrot.slane %v315, 1
        %v317 = vadd.f32 %v315, %v316
        %v318 = vadd.f32 %v282, %v286
        %v319 = vsel %vm219, %v290, 0.0
        %v320 = vadd.f32 %v318, %v319
        %v321 = vrot.slane %v320, 4
        %v322 = vadd.f32 %v320, %v321
        %v323 = vrot.slane %v322, 2
        %v324 = vadd.f32 %v322, %v323
        %v325 = vrot.slane %v324, 1
        %v326 = vadd.f32 %v324, %v325
        %v327 = vrcp.pop %v299
        %v328 = vmul.f32 %v299, %v327
        %v329 = vsub.f32 1.0, %v328
        %v330 = vmul.f32 %v327, %v329
        %v331 = vadd.f32 %v327, %v330
        %vm332 = vweird.f32 %v299
        %vm333 = vweird.f32 %v327
        %vm334 = vmor %vm332, %vm333
        %v335 = vsel %vm334, %v327, %v331
        %v336 = vand.u32 2147483647, %v299
        %vm337 = vcmp.eq.f32.partialorder %v336, 8.507059e+37
        %v338 = vand.u32 %v299, 2147483648
        %v339 = vor.u32 1.1754944e-38, %v338
        %v340 = vsel %vm337, %v339, %v335
        %v341 = vmul.f32 1.0, %v340
        %v342 = vrcp.pop %v308
        %v343 = vmul.f32 %v308, %v342
        %v344 = vsub.f32 1.0, %v343
        %v345 = vmul.f32 %v342, %v344
        %v346 = vadd.f32 %v342, %v345
        %vm347 = vweird.f32 %v308
        %vm348 = vweird.f32 %v342
        %vm349 = vmor %vm347, %vm348
        %v350 = vsel %vm349, %v342, %v346
        %v351 = vand.u32 2147483647, %v308
        %vm352 = vcmp.eq.f32.partialorder %v351, 8.507059e+37
        %v353 = vand.u32 %v308, 2147483648
        %v354 = vor.u32 1.1754944e-38, %v353
        %v355 = vsel %vm352, %v354, %v350
        %v356 = vmul.f32 1.0, %v355
        %v357 = vrcp.pop %v317
        %v358 = vmul.f32 %v317, %v357
        %v359 = vsub.f32 1.0, %v358
        %v360 = vmul.f32 %v357, %v359
        %v361 = vadd.f32 %v357, %v360
        %vm362 = vweird.f32 %v317
        %vm363 = vweird.f32 %v357
        %vm364 = vmor %vm362, %vm363
        %v365 = vsel %vm364, %v357, %v361
        %v366 = vand.u32 2147483647, %v317
        %vm367 = vcmp.eq.f32.partialorder %v366, 8.507059e+37
        %v368 = vand.u32 %v317, 2147483648
        %v369 = vor.u32 1.1754944e-38, %v368
        %v370 = vsel %vm367, %v369, %v365
        %v371 = vmul.f32 1.0, %v370
        %v372 = vrcp.pop %v326
        %v373 = vmul.f32 %v326, %v372
        %v374 = vsub.f32 1.0, %v373
        %v375 = vmul.f32 %v372, %v374
        %v376 = vadd.f32 %v372, %v375
        %vm377 = vweird.f32 %v326
        %vm378 = vweird.f32 %v372
        %vm379 = vmor %vm377, %vm378
        %v380 = vsel %vm379, %v372, %v376
        %v381 = vand.u32 2147483647, %v326
        %vm382 = vcmp.eq.f32.partialorder %v381, 8.507059e+37
        %v383 = vand.u32 %v326, 2147483648
        %v384 = vor.u32 1.1754944e-38, %v383
        %v385 = vsel %vm382, %v384, %v380
        %v386 = vmul.f32 1.0, %v385
        %v387 = vlog2.pop %v299
        %v388 = vmul.f32 %v387, 0.6931472
        %v389 = vlog2.pop %v308
        %v390 = vmul.f32 %v389, 0.6931472
        %v391 = vlog2.pop %v317
        %v392 = vmul.f32 %v391, 0.6931472
        %v393 = vlog2.pop %v326
        %v394 = vmul.f32 %v393, 0.6931472
        %v395 = vmul.f32 %v268, %v341
        %v396 = vmul.f32 %v270, %v356
        %v397 = vmul.f32 %v272, %v341
        %v398 = vmul.f32 %v274, %v356
        %v399 = vmul.f32 %v276, %v341
        %v400 = vmul.f32 %v278, %v356
        %v401 = vmul.f32 %v280, %v371
        %v402 = vmul.f32 %v282, %v386
        %v403 = vmul.f32 %v284, %v371
        %v404 = vmul.f32 %v286, %v386
        %v405 = vmul.f32 %v288, %v371
        %v406 = vmul.f32 %v290, %v386
        %v407 = vlaneseq
        %v408 = vshrl.u32 %v407, 7
        %v409 = vadd.s32 %v408, 8
        %v410 = vadd.s32 %v408, 16
        %v411 = vrot.slane %v217, 1
        %v412 = vrot.slane %v217, 2
        %v413 = vrot.slane %v217, 3
        %vm414 = vcmask 1040384
        %v415 = vsel %vm414, %v217, %v411
        %vm416 = vcmask 1042434
        %v417 = vsel %vm416, %v412, %v413
        %vm418 = vcmask 1041408
        %v419 = vsel %vm418, %v415, %v417
        %vm420 = vcmask 1041409
        %v421 = vsel %vm420, %v217, %v411
        %vm422 = vcmask 1043459
        %v423 = vsel %vm422, %v412, %v413
        %vm424 = vcmask 1042433
        %v425 = vsel %vm424, %v421, %v423
        %v426 = vrot.slane %v425, 1
        %v427 = vperm.slane %v419, 0
        %v428 = vperm.slane %v419, 1
        %v429 = vperm.slane %v426, 0
        %v430 = vperm.slane %v426, 1
        %vm431 = vcmp.eq.s32.totalorder %v408, %v427
        %vm432 = vcmp.eq.s32.totalorder %v408, %v428
        %vm433 = vcmp.eq.s32.totalorder %v409, %v427
        %vm434 = vcmp.eq.s32.totalorder %v409, %v428
        %vm435 = vcmp.eq.s32.totalorder %v410, %v427
        %vm436 = vcmp.eq.s32.totalorder %v410, %v428
        %vm437 = vcmp.eq.s32.totalorder %v408, %v429
        %vm438 = vcmp.eq.s32.totalorder %v408, %v430
        %vm439 = vcmp.eq.s32.totalorder %v409, %v429
        %vm440 = vcmp.eq.s32.totalorder %v409, %v430
        %vm441 = vcmp.eq.s32.totalorder %v410, %v429
        %vm442 = vcmp.eq.s32.totalorder %v410, %v430
        %v443 = vsel %vm431, 1, 0
        %v444 = vsel %vm432, 1, 0
        %v445 = vsel %vm433, 1, 0
        %v446 = vsel %vm434, 1, 0
        %v447 = vsel %vm435, 1, 0
        %v448 = vsel %vm436, 1, 0
        %v449 = vsel %vm437, 1, 0
        %v450 = vsel %vm438, 1, 0
        %v451 = vsel %vm439, 1, 0
        %v452 = vsel %vm440, 1, 0
        %v453 = vsel %vm441, 1, 0
        %v454 = vsel %vm442, 1, 0
        %v455 = vcvt.s32.f32 %v443
        %v456 = vcvt.s32.f32 %v444
        %v457 = vcvt.s32.f32 %v445
        %v458 = vcvt.s32.f32 %v446
        %v459 = vcvt.s32.f32 %v447
        %v460 = vcvt.s32.f32 %v448
        %v461 = vcvt.s32.f32 %v449
        %v462 = vcvt.s32.f32 %v450
        %v463 = vcvt.s32.f32 %v451
        %v464 = vcvt.s32.f32 %v452
        %v465 = vcvt.s32.f32 %v453
        %v466 = vcvt.s32.f32 %v454
        %vm467 = vcmp.ne.s32.totalorder %v217, 255
        %v468 = vsel %vm467, 1, 0
        %v469 = vcvt.s32.f32 %v468
        %v470 = vld [vmem:[#allocation2] sm:$0x3]
        %v471 = vmul.f32 %v395, %v455
        %v472 = vmul.f32 %v396, %v456
        %v473 = vmul.f32 %v397, %v457
        %v474 = vmul.f32 %v398, %v458
        %v475 = vmul.f32 %v399, %v459
        %v476 = vmul.f32 %v400, %v460
        %v477 = vmul.f32 %v401, %v461
        %v478 = vmul.f32 %v402, %v462
        %v479 = vmul.f32 %v403, %v463
        %v480 = vmul.f32 %v404, %v464
        %v481 = vmul.f32 %v405, %v465
        %v482 = vmul.f32 %v406, %v466
        %v483 = vadd.f32 %v471, %v472
        %484 = vadd.xlane.f32.xlu0 %v483
        %v485 = vpop.xlane.xlu0 %484
        %v486 = vadd.f32 %v473, %v474
        %487 = vadd.xlane.f32.xlu0 %v486
        %v488 = vpop.xlane.xlu0 %487
        %v489 = vsel %vm219, %v475, 0.0
        %v490 = vsel %vm219, %v476, 0.0
        %v491 = vadd.f32 %v489, %v490
        %492 = vadd.xlane.f32.xlu0 %v491
        %v493 = vpop.xlane.xlu0 %492
        %v494 = vadd.f32 %v477, %v478
        %495 = vadd.xlane.f32.xlu0 %v494
        %v496 = vpop.xlane.xlu0 %495
        %v497 = vadd.f32 %v479, %v480
        %498 = vadd.xlane.f32.xlu0 %v497
        %v499 = vpop.xlane.xlu0 %498
        %v500 = vsel %vm219, %v481, 0.0
        %v501 = vsel %vm219, %v482, 0.0
        %v502 = vadd.f32 %v500, %v501
        %503 = vadd.xlane.f32.xlu0 %v502
        %v504 = vpop.xlane.xlu0 %503
        %v511 = vlaneseq
        %v512 = vand.u32 %v511, 127
        %v513 = vperm.slane %v485, %v512
        %v514 = vadd.s32 %v512, 4294967288
        %v515 = vperm.slane %v488, %v514
        %vm516 = vcmask 130112
        %v517 = vsel %vm516, %v515, %v513
        %v518 = vadd.s32 %v512, 4294967280
        %v519 = vperm.slane %v493, %v518
        %vm520 = vcmask 195712
        %v521 = vsel %vm520, %v519, %v517
        %v522 = vperm.slane %v496, %v512
        %v523 = vperm.slane %v499, %v514
        %v524 = vsel %vm516, %v523, %v522
        %v525 = vperm.slane %v504, %v518
        %v526 = vsel %vm520, %v525, %v524
        %v527 = vsel %vm420, %v526, %v521
        %v529 = vadd.f32 %v470, %v527
        %vm530 = vcmask 148480
        %531 = vst.msk [vmem:[#allocation2] sm:$0x3] %vm530, %v529
        %v532 = vld [vmem:[#allocation3] sm:$0x3]
        %v533 = vmul.f32 %v395, %v395
        %v534 = vmul.f32 %v396, %v396
        %v535 = vmul.f32 %v397, %v397
        %v536 = vmul.f32 %v398, %v398
        %v537 = vmul.f32 %v399, %v399
        %v538 = vmul.f32 %v400, %v400
        %v539 = vmul.f32 %v401, %v401
        %v540 = vmul.f32 %v402, %v402
        %v541 = vmul.f32 %v403, %v403
        %v542 = vmul.f32 %v404, %v404
        %v543 = vmul.f32 %v405, %v405
        %v544 = vmul.f32 %v406, %v406
        %v545 = vadd.f32 %v533, %v534
        %546 = vadd.xlane.f32.xlu0 %v545
        %v547 = vpop.xlane.xlu0 %546
        %v548 = vadd.f32 %v535, %v536
        %549 = vadd.xlane.f32.xlu0 %v548
        %v550 = vpop.xlane.xlu0 %549
        %v551 = vsel %vm219, %v537, 0.0
        %v552 = vsel %vm219, %v538, 0.0
        %v553 = vadd.f32 %v551, %v552
        %554 = vadd.xlane.f32.xlu0 %v553
        %v555 = vpop.xlane.xlu0 %554
        %v556 = vadd.f32 %v539, %v540
        %557 = vadd.xlane.f32.xlu0 %v556
        %v558 = vpop.xlane.xlu0 %557
        %v559 = vadd.f32 %v541, %v542
        %560 = vadd.xlane.f32.xlu0 %v559
        %v561 = vpop.xlane.xlu0 %560
        %v562 = vsel %vm219, %v543, 0.0
        %v563 = vsel %vm219, %v544, 0.0
        %v564 = vadd.f32 %v562, %v563
        %565 = vadd.xlane.f32.xlu0 %v564
        %v566 = vpop.xlane.xlu0 %565
        %v573 = vperm.slane %v547, %v512
        %v574 = vperm.slane %v550, %v514
        %v575 = vsel %vm516, %v574, %v573
        %v576 = vperm.slane %v555, %v518
        %v577 = vsel %vm520, %v576, %v575
        %v578 = vperm.slane %v558, %v512
        %v579 = vperm.slane %v561, %v514
        %v580 = vsel %vm516, %v579, %v578
        %v581 = vperm.slane %v566, %v518
        %v582 = vsel %vm520, %v581, %v580
        %v583 = vsel %vm420, %v582, %v577
        %v585 = vadd.f32 %v532, %v583
        %586 = vst.msk [vmem:[#allocation3] sm:$0x3] %vm530, %v585
        %v587 = vld [vmem:[#allocation4] sm:$0x3]
        %v588 = vadd.f32 %v455, %v456
        %589 = vadd.xlane.f32.xlu0 %v588
        %v590 = vpop.xlane.xlu0 %589
        %v591 = vadd.f32 %v457, %v458
        %592 = vadd.xlane.f32.xlu0 %v591
        %v593 = vpop.xlane.xlu0 %592
        %v594 = vsel %vm219, %v459, 0.0
        %v595 = vsel %vm219, %v460, 0.0
        %v596 = vadd.f32 %v594, %v595
        %597 = vadd.xlane.f32.xlu0 %v596
        %v598 = vpop.xlane.xlu0 %597
        %v599 = vadd.f32 %v461, %v462
        %600 = vadd.xlane.f32.xlu0 %v599
        %v601 = vpop.xlane.xlu0 %600
        %v602 = vadd.f32 %v463, %v464
        %603 = vadd.xlane.f32.xlu0 %v602
        %v604 = vpop.xlane.xlu0 %603
        %v605 = vsel %vm219, %v465, 0.0
        %v606 = vsel %vm219, %v466, 0.0
        %v607 = vadd.f32 %v605, %v606
        %608 = vadd.xlane.f32.xlu0 %v607
        %v609 = vpop.xlane.xlu0 %608
        %v616 = vperm.slane %v590, %v512
        %v617 = vperm.slane %v593, %v514
        %v618 = vsel %vm516, %v617, %v616
        %v619 = vperm.slane %v598, %v518
        %v620 = vsel %vm520, %v619, %v618
        %v621 = vperm.slane %v601, %v512
        %v622 = vperm.slane %v604, %v514
        %v623 = vsel %vm516, %v622, %v621
        %v624 = vperm.slane %v609, %v518
        %v625 = vsel %vm520, %v624, %v623
        %v626 = vsel %vm420, %v625, %v620
        %v628 = vadd.f32 %v587, %v626
        %629 = vst.msk [vmem:[#allocation4] sm:$0x3] %vm530, %v628
        %v630 = vmul.f32 %v255, %v455
        %v631 = vmul.f32 %v256, %v456
        %v632 = vmul.f32 %v257, %v457
        %v633 = vmul.f32 %v258, %v458
        %v634 = vmul.f32 %v259, %v459
        %v635 = vmul.f32 %v260, %v460
        %v636 = vmul.f32 %v261, %v461
        %v637 = vmul.f32 %v262, %v462
        %v638 = vmul.f32 %v263, %v463
        %v639 = vmul.f32 %v264, %v464
        %v640 = vmul.f32 %v265, %v465
        %v641 = vmul.f32 %v266, %v466
        %v642 = vadd.f32 %v630, %v632
        %v643 = vsel %vm219, %v634, 0.0
        %v644 = vadd.f32 %v642, %v643
        %v645 = vrot.slane %v644, 4
        %v646 = vadd.f32 %v644, %v645
        %v647 = vrot.slane %v646, 2
        %v648 = vadd.f32 %v646, %v647
        %v649 = vrot.slane %v648, 1
        %v650 = vadd.f32 %v648, %v649
        %v651 = vadd.f32 %v631, %v633
        %v652 = vsel %vm219, %v635, 0.0
        %v653 = vadd.f32 %v651, %v652
        %v654 = vrot.slane %v653, 4
        %v655 = vadd.f32 %v653, %v654
        %v656 = vrot.slane %v655, 2
        %v657 = vadd.f32 %v655, %v656
        %v658 = vrot.slane %v657, 1
        %v659 = vadd.f32 %v657, %v658
        %v660 = vadd.f32 %v636, %v638
        %v661 = vsel %vm219, %v640, 0.0
        %v662 = vadd.f32 %v660, %v661
        %v663 = vrot.slane %v662, 4
        %v664 = vadd.f32 %v662, %v663
        %v665 = vrot.slane %v664, 2
        %v666 = vadd.f32 %v664, %v665
        %v667 = vrot.slane %v666, 1
        %v668 = vadd.f32 %v666, %v667
        %v669 = vadd.f32 %v637, %v639
        %v670 = vsel %vm219, %v641, 0.0
        %v671 = vadd.f32 %v669, %v670
        %v672 = vrot.slane %v671, 4
        %v673 = vadd.f32 %v671, %v672
        %v674 = vrot.slane %v673, 2
        %v675 = vadd.f32 %v673, %v674
        %v676 = vrot.slane %v675, 1
        %v677 = vadd.f32 %v675, %v676
        %v678 = vld [vmem:[#allocation5] sm:$0xf]
        %v683 = vrot.slane %v390, 6
        %v684 = vrot.slane %v394, 6
        %v685 = vsel %vm418, %v388, %v683
        %v686 = vsel %vm418, %v392, %v684
        %vm687 = vcmask 1044484
        %v688 = vsel %vm687, %v685, %v685
        %vm689 = vcmask 1046534
        %v690 = vsel %vm689, %v685, %v688
        %v691 = vrot.slane %v686, 7
        %v692 = vsel %vm420, %v691, %v690
        %v693 = vsel %vm422, %v691, %v692
        %vm694 = vcmask 1045509
        %v695 = vsel %vm694, %v691, %v693
        %vm696 = vcmask 1047559
        %v697 = vsel %vm696, %v691, %v695
        %v699 = vmul.f32 %v469, %v697
        %v704 = vrot.slane %v659, 6
        %v705 = vrot.slane %v677, 6
        %v706 = vsel %vm418, %v650, %v704
        %v707 = vsel %vm418, %v668, %v705
        %v708 = vsel %vm687, %v706, %v706
        %v709 = vsel %vm689, %v706, %v708
        %v710 = vrot.slane %v707, 7
        %v711 = vsel %vm420, %v710, %v709
        %v712 = vsel %vm422, %v710, %v711
        %v713 = vsel %vm694, %v710, %v712
        %v714 = vsel %vm696, %v710, %v713
        %v716 = vsub.f32 %v699, %v714
        %v717 = vadd.f32 %v678, %v716
        %718 = vst [vmem:[#allocation5] sm:$0xf] %v717
        %v719 = vld [vmem:[#allocation6] sm:$0xf]
        %v720 = vadd.f32 %v719, %v469
        %721 = vst [vmem:[#allocation6] sm:$0xf] %v720
        %p722 = scmp.eq.s32.totalorder %s14, 3
        // Predicated region
        $region56: #{tpu_custom_call.1} parent=46 // pred_check
          %p723 = pneg %p722
        $region57: #{tpu_custom_call.1} parent=46 // pred_check_branch
          %725 = sbr.rel (%p723) target = $region59
        $region58: #{tpu_custom_call.1} parent=46 // pred_region
          %v726 = vld [vmem:[#allocation2] sm:$0x3]
          %v727 = vmul.f32 %v726, 2.0
          %v728 = vld [vmem:[#allocation3] sm:$0x3]
          %v729 = vld [vmem:[#allocation4] sm:$0x3]
          %v730 = vadd.f32 %v728, %v729
          %v731 = vadd.f32 %v730, 1e-08
          %v732 = vrcp.pop %v731
          %v733 = vmul.f32 %v731, %v732
          %v734 = vsub.f32 1.0, %v733
          %v735 = vmul.f32 %v732, %v734
          %v736 = vadd.f32 %v732, %v735
          %vm737 = vweird.f32 %v731
          %vm738 = vweird.f32 %v732
          %vm739 = vmor %vm737, %vm738
          %v740 = vsel %vm739, %v732, %v736
          %v741 = vand.u32 2147483647, %v731
          %vm742 = vcmp.eq.f32.partialorder %v741, 8.507059e+37
          %v743 = vand.u32 %v731, 2147483648
          %v744 = vor.u32 1.1754944e-38, %v743
          %v745 = vsel %vm742, %v744, %v740
          %v746 = vmul.f32 %v727, %v745
          %v747 = vsel %vm530, %v746, 0.0
          %748 = vadd.xlane.f32.xlu0 %v747
          %v749 = vpop.xlane.xlu0 %748
          %v750 = vrot.slane %v749, 4
          %v751 = vadd.f32 %v749, %v750
          %v752 = vrot.slane %v751, 2
          %v753 = vadd.f32 %v751, %v752
          %v754 = vrot.slane %v753, 1
          %v755 = vadd.f32 %v753, %v754
          %s756 = vtos %v755
          %v757 = vstv %s756
          %v758 = vrcp.pop 38.0
          %v759 = vmul.f32 38.0, %v758
          %v760 = vsub.f32 1.0, %v759
          %v761 = vmul.f32 %v758, %v760
          %v762 = vadd.f32 %v758, %v761
          %vm763 = vweird.f32 %v758
          %v764 = vsel %vm763, %v758, %v762
          %v765 = vmul.f32 %v757, %v764
          %v766 = vld [vmem:[#allocation5] sm:$0xf]
          %768 = vst [vmem:[#allocation1] ss:$4 sm:$0xff] %v766
          %v769 = vld.sshfl [vmem:[#allocation1] sm:$0xff pattern:$0x73625140]
          %v770 = vld.sshfl [vmem:[#allocation1 + $0x8] sm:$0xff pattern:$0x73625140]
          %v773 = vsel %vm418, %v769, 0.0
          %v774 = vsel %vm418, %v770, 0.0
          %v775 = vadd.f32 %v773, %v774
          %776 = vadd.xlane.f32.xlu0 %v775
          %v777 = vpop.xlane.xlu0 %776
          %v778 = vrot.slane %v777, 4
          %v779 = vadd.f32 %v777, %v778
          %v780 = vrot.slane %v779, 2
          %v781 = vadd.f32 %v779, %v780
          %v782 = vrot.slane %v781, 1
          %v783 = vadd.f32 %v781, %v782
          %s784 = vtos %v783
          %v785 = vstv %s784
          %v786 = vld [vmem:[#allocation6] sm:$0xf]
          %788 = vst [vmem:[#allocation1] ss:$4 sm:$0xff] %v786
          %v789 = vld.sshfl [vmem:[#allocation1] sm:$0xff pattern:$0x73625140]
          %v790 = vld.sshfl [vmem:[#allocation1 + $0x8] sm:$0xff pattern:$0x73625140]
          %v793 = vsel %vm418, %v789, 0.0
          %v794 = vsel %vm418, %v790, 0.0
          %v795 = vadd.f32 %v793, %v794
          %796 = vadd.xlane.f32.xlu0 %v795
          %v797 = vpop.xlane.xlu0 %796
          %v798 = vrot.slane %v797, 4
          %v799 = vadd.f32 %v797, %v798
          %v800 = vrot.slane %v799, 2
          %v801 = vadd.f32 %v799, %v800
          %v802 = vrot.slane %v801, 1
          %v803 = vadd.f32 %v801, %v802
          %s804 = vtos %v803
          %v805 = vstv %s804
          %v806 = vrcp.pop %v805
          %v807 = vmul.f32 %v805, %v806
          %v808 = vsub.f32 1.0, %v807
          %v809 = vmul.f32 %v806, %v808
          %v810 = vadd.f32 %v806, %v809
          %vm811 = vweird.f32 %v805
          %vm812 = vweird.f32 %v806
          %vm813 = vmor %vm811, %vm812
          %v814 = vsel %vm813, %v806, %v810
          %v815 = vand.u32 2147483647, %v805
          %vm816 = vcmp.eq.f32.partialorder %v815, 8.507059e+37
          %v817 = vand.u32 %v805, 2147483648
          %v818 = vor.u32 1.1754944e-38, %v817
          %v819 = vsel %vm816, %v818, %v814
          %v820 = vmul.f32 %v785, %v819
          %v821 = vadd.f32 %v820, 1.0
          %v822 = vsub.f32 %v821, %v765
          %v823 = vmul.f32 %v822, 0.5
          %vm824 = vcmask 0
          %825 = vst.msk [vmem:[#allocation8] sm:$0x1] %vm824, %v823
        $region59: #{tpu_custom_call.1} parent=46 // pred_fallthru
          _
        // Predicated region
        $region60: #{tpu_custom_call.1} parent=46 // pred_check
          %p826 = pneg %p79
        $region61: #{tpu_custom_call.1} parent=46 // pred_check_branch
          %828 = sbr.rel (%p826) target = $region63
        $region62: #{tpu_custom_call.1} parent=46 // pred_region
          %830 = vsyncadd [#allocation9], 0
          %s832 = sshll.u32 [#allocation8], 4
          %s833 = int_to_ptr.vmem [resolvable:$true] %s832
          %s834 = sshll.u32 %s2, 4
          %s835 = int_to_ptr.hbm [resolvable:$true] %s834
          %837 = dma.vmem_to_hbm [thread:$0]  %s833, 16, %s835, [#allocation9]
        $region63: #{tpu_custom_call.1} parent=46 // pred_fallthru
          _
        // Predicated region
        $region64: #{tpu_custom_call.1} parent=46 // pred_check
          %p838 = pneg %p79
        $region65: #{tpu_custom_call.1} parent=46 // pred_check_branch
          %840 = sbr.rel (%p838) target = $region67
        $region66: #{tpu_custom_call.1} parent=46 // pred_region
          %842 = dma.done [#allocation9], 16
        $region67: #{tpu_custom_call.1} parent=46 // pred_fallthru
          _
      $region47: #{tpu_custom_call.1} parent=5 // pred_fallthru
        _
      %p843 = scmp.le.s32.totalorder 2, %s9
      // Predicated region
      $region68: #{tpu_custom_call.1} parent=5 // pred_check
        %p844 = pneg %p843
      $region69: #{tpu_custom_call.1} parent=5 // pred_check_branch
        %846 = sbr.rel (%p844) target = $region71
      $region70: #{tpu_custom_call.1} parent=5 // pred_region
        %s847 = ssub.s32 %s9, 2
      $region71: #{tpu_custom_call.1} parent=5 // pred_fallthru
        _
    $region6: #{tpu_custom_call.1} parent=1 // loop_footer
      %s13 = sadd.s32 1, %s9
    $region7: #{tpu_custom_call.1} parent=1 // loop_footer_branch
      %8 = sbr.rel target = $region3
    $region8: #{tpu_custom_call.1} parent=1 // loop_exit
      _
    %848 = vsyncpa [#allocation9], 1
    %s849 = scalar_lea.sflag [#allocation9], 1
    %850 = vsyncpa %s849, 1

</llo_original>
